<compile_context>
chip_gen: v7x
topology: tpu7x:2x2x1
jax: 0.10.0
libtpu: 0.0.40
codegen_flags: <defaults>
</compile_context>

<pallas_src>
import jax
import jax.numpy as jnp
from jax.experimental import pallas as pl
from jax.experimental.pallas import tpu as pltpu


_TILE_BUDGET_BYTES = 4 << 20   # target for double-buffered x + out batch tiles
_MAX_BATCH_TILE = 2048


def _cdiv(a, b):
    return (a + b - 1) // b


def _round_up(x, m):
    return ((x + m - 1) // m) * m


def _bsd_kernel(x_ref, w_ref, b_ref, o_ref, wt_ref):
    # x_ref : (bt, in_p)        batch tile of block b's input feature slice
    # w_ref : (1, out_p, in_p)  block b's weight in its natural (out, in) layout
    # b_ref : (1, 1, out_p)     block b's bias
    # o_ref : (bt, out_p)       lane-dense output tile
    # wt_ref: (in_p, out_p)     VMEM scratch holding W^T for the current block

    # Transpose the weight once per block (first inner grid step) on the XLU;
    # it stays resident in VMEM for all n_bt batch tiles of this block, so the
    # MXU is fed `x @ W^T` with no per-step relayout and no wrapper-side
    # HBM round-trip of the weight.
    @pl.when(pl.program_id(1) == 0)
    def _():
        wt_ref[...] = w_ref[0].T

    y = jnp.dot(x_ref[...], wt_ref[...], preferred_element_type=jnp.float32)
    o_ref[...] = (y + b_ref[0]).astype(o_ref.dtype)


def _pick_batch_tile(batch, in_p, out_p, itemsize,
                     tile_budget_bytes, max_batch_tile):
    """Pick (bt, n_bt) so 2*bt*(in_p+out_p)*itemsize ~= tile_budget_bytes."""
    per_row = 2 * (in_p + out_p) * itemsize          # double-buffered x + out
    cap = min(max_batch_tile, tile_budget_bytes // max(per_row, 1))
    cap = max(8, (cap // 8) * 8)
    if batch <= cap:
        return _round_up(batch, 8), 1
    n_bt = _cdiv(batch, cap)
    bt = _round_up(_cdiv(batch, n_bt), 8)
    return bt, n_bt


def block_sparse_diagonal(x, weight, bias, *,
                          tile_budget_bytes=_TILE_BUDGET_BYTES,
                          max_batch_tile=_MAX_BATCH_TILE):
    """Forward of BlockSparseDiagonal.

    x: (batch, nb*in_f), weight: (nb, out_f, in_f), bias: (nb, out_f)
    returns: (batch, nb*out_f)
    """
    batch = x.shape[0]
    nb, out_f, in_f = weight.shape
    assert x.shape[1] == nb * in_f, "x feature dim must be nb * in_f"

    # --- Lane-align per-block feature dims (multiples of 128) once, so every
    # grid step has lane-dense loads/stores and a tile-aligned XLU transpose.
    in_p = _round_up(in_f, 128)
    out_p = _round_up(out_f, 128)
    pad_features = (in_p != in_f) or (out_p != out_f)

    if pad_features:
        w = jnp.pad(weight, ((0, 0), (0, out_p - out_f), (0, in_p - in_f)))
        b = jnp.pad(bias, ((0, 0), (0, out_p - out_f)))
        x_in = jnp.pad(x.reshape(batch, nb, in_f),
                       ((0, 0), (0, 0), (0, in_p - in_f)))
        x_in = x_in.reshape(batch, nb * in_p)
    else:
        w = weight
        b = bias
        x_in = x
    b3 = b.reshape(nb, 1, out_p)

    # --- Batch tiling: scale bt with feature size, pad awkward batches.
    itemsize = jnp.dtype(x.dtype).itemsize
    bt, n_bt = _pick_batch_tile(batch, in_p, out_p, itemsize,
                                tile_budget_bytes, max_batch_tile)
    pbatch = bt * n_bt
    if pbatch != batch:
        x_in = jnp.pad(x_in, ((0, pbatch - batch), (0, 0)))

    # --- Explicit VMEM budget (double-buffered tiles + resident W / W^T).
    wbytes = jnp.dtype(w.dtype).itemsize
    vmem_need = (2 * bt * in_p * itemsize        # x tiles
                 + 2 * bt * out_p * itemsize     # out tiles
                 + 2 * out_p * in_p * wbytes     # weight tile (double-buffered)
                 + in_p * out_p * wbytes         # W^T scratch
                 + 2 * 8 * out_p * wbytes)       # bias (sublane-padded)
    vmem_limit = int(min(max(vmem_need + (4 << 20), 32 << 20), 128 << 20))

    out = pl.pallas_call(
        _bsd_kernel,
        out_shape=jax.ShapeDtypeStruct((pbatch, nb * out_p), x.dtype),
        grid_spec=pltpu.PrefetchScalarGridSpec(
            num_scalar_prefetch=0,
            grid=(nb, n_bt),                       # block axis OUTERMOST
            in_specs=[
                pl.BlockSpec((bt, in_p), lambda nb_i, m: (m, nb_i)),
                pl.BlockSpec((1, out_p, in_p), lambda nb_i, m: (nb_i, 0, 0)),
                pl.BlockSpec((1, 1, out_p), lambda nb_i, m: (nb_i, 0, 0)),
            ],
            out_specs=pl.BlockSpec((bt, out_p), lambda nb_i, m: (m, nb_i)),
            scratch_shapes=[pltpu.VMEM((in_p, out_p), w.dtype)],
        ),
        compiler_params=pltpu.CompilerParams(
            # Inner axis must be "arbitrary": the W^T scratch is filled only
            # at program_id(1) == 0 and reused sequentially across that axis.
            dimension_semantics=("parallel", "arbitrary"),
            vmem_limit_bytes=vmem_limit),
    )(x_in, w, b3)

    # --- Strip padding.
    if pad_features:
        out = out.reshape(pbatch, nb, out_p)[:, :, :out_f]
        out = out.reshape(pbatch, nb * out_f)
    if pbatch != batch:
        out = out[:batch]
    return out


def _reference(x, weight, bias):
    batch = x.shape[0]
    nb, out_f, in_f = weight.shape
    xb = x.reshape(batch, nb, in_f)
    y = jnp.einsum('bni,noi->bno', xb, weight,
                   precision=jax.lax.Precision.HIGHEST)
    y = y + bias[None, :, :]
    return y.reshape(batch, nb * out_f)


if __name__ == "__main__":
    key = jax.random.PRNGKey(0)

    # --- Test 1: lane-aligned shapes -> fast path (no padding, no wrapper
    #             copies, transpose-once-per-block in VMEM).
    k1, k2, k3 = jax.random.split(key, 3)
    batch, nb, in_f, out_f = 16, 4, 128, 128
    weight = jax.random.normal(k1, (nb, out_f, in_f), jnp.float32) * 0.1
    bias = jax.random.normal(k2, (nb, out_f), jnp.float32) * 0.1
    x = jax.random.normal(k3, (batch, nb * in_f), jnp.float32)

    y = jax.block_until_ready(block_sparse_diagonal(x, weight, bias))
    y_ref = _reference(x, weight, bias)
    assert y.shape == (batch, nb * out_f)
    assert jnp.allclose(y, y_ref, atol=5e-3, rtol=5e-3)

    # --- Test 2: small non-lane-aligned feature dims + batch not a multiple
    #             of 8 -> feature/batch zero-padding, same lane-dense path.
    k4, k5, k6 = jax.random.split(jax.random.PRNGKey(1), 3)
    batch2, nb2, in2, out2 = 6, 4, 32, 16
    w2 = jax.random.normal(k4, (nb2, out2, in2), jnp.float32) * 0.1
    b2 = jax.random.normal(k5, (nb2, out2), jnp.float32) * 0.1
    x2 = jax.random.normal(k6, (batch2, nb2 * in2), jnp.float32)

    y2 = jax.block_until_ready(block_sparse_diagonal(x2, w2, b2))
    y2_ref = _reference(x2, w2, b2)
    assert y2.shape == (batch2, nb2 * out2)
    assert jnp.allclose(y2, y2_ref, atol=5e-3, rtol=5e-3)

    # --- Test 3: force multiple batch tiles (tiny tile budget) so the
    #             transpose-once / weight-residency path across the inner
    #             grid axis and batch padding are exercised.
    k7, k8, k9 = jax.random.split(jax.random.PRNGKey(2), 3)
    batch3, nb3, in3, out3 = 100, 2, 128, 128
    w3 = jax.random.normal(k7, (nb3, out3, in3), jnp.float32) * 0.1
    b3 = jax.random.normal(k8, (nb3, out3), jnp.float32) * 0.1
    x3 = jax.random.normal(k9, (batch3, nb3 * in3), jnp.float32)

    y3 = jax.block_until_ready(
        block_sparse_diagonal(x3, w3, b3, tile_budget_bytes=64 * 1024))
    y3_ref = _reference(x3, w3, b3)
    assert y3.shape == (batch3, nb3 * out3)
    assert jnp.allclose(y3, y3_ref, atol=5e-3, rtol=5e-3)

    print("KERNEL_OK")
</pallas_src>

<mosaic_0001>
module attributes {stable_mosaic.version = 11 : i64} {
  func.func @_bsd_kernel(%arg0: i32, %arg1: i32, %arg2: memref<16x128xf32, #tpu.memory_space<vmem>>, %arg3: memref<1x128x128xf32, #tpu.memory_space<vmem>>, %arg4: memref<1x1x128xf32, #tpu.memory_space<vmem>>, %arg5: memref<16x128xf32, #tpu.memory_space<vmem>>, %arg6: memref<128x128xf32, #tpu.memory_space<vmem>>) attributes {dimension_semantics = [#tpu.dimension_semantics<parallel>, #tpu.dimension_semantics<arbitrary>], iteration_bounds = array<i64: 4, 1>, scalar_prefetch = 0 : i64, scratch_operands = 1 : i64, tpu.core_type = #tpu.core_type<tc>, window_params = [{transform_indices = @transform_0, window_bounds = array<i64: 16, 128>}, {transform_indices = @transform_1, window_bounds = array<i64: 1, 128, 128>}, {transform_indices = @transform_2, window_bounds = array<i64: 1, 1, 128>}, {transform_indices = @transform_3, window_bounds = array<i64: 16, 128>}]} {
    %c0_i32 = arith.constant 0 : i32
    %0 = arith.cmpi eq, %arg1, %c0_i32 : i32
    %1 = arith.extui %0 : i1 to i32
    %c0_i32_0 = arith.constant 0 : i32
    %2 = arith.cmpi ne, %1, %c0_i32_0 : i32
    scf.if %2 {
      %c0_9 = arith.constant 0 : index
      %c0_10 = arith.constant 0 : index
      %c0_11 = arith.constant 0 : index
      %11 = vector.load %arg3[%c0_9, %c0_10, %c0_11] : memref<1x128x128xf32, #tpu.memory_space<vmem>>, vector<1x128x128xf32>
      %12 = vector.shape_cast %11 : vector<1x128x128xf32> to vector<128x128xf32>
      %13 = tpu.transpose %12, [1, 0] : vector<128x128xf32> -> vector<128x128xf32>
      %c0_12 = arith.constant 0 : index
      %c0_13 = arith.constant 0 : index
      %14 = vector.load %arg6[%c0_12, %c0_13] : memref<128x128xf32, #tpu.memory_space<vmem>>, vector<128x128xf32>
      tpu.vector_store %arg6[%c0_12, %c0_13], %13 {strides = array<i32>} : memref<128x128xf32, #tpu.memory_space<vmem>>, vector<128x128xf32>,
    } else {
    }
    %c0 = arith.constant 0 : index
    %c0_1 = arith.constant 0 : index
    %3 = vector.load %arg2[%c0, %c0_1] : memref<16x128xf32, #tpu.memory_space<vmem>>, vector<16x128xf32>
    %c0_2 = arith.constant 0 : index
    %c0_3 = arith.constant 0 : index
    %4 = vector.load %arg6[%c0_2, %c0_3] : memref<128x128xf32, #tpu.memory_space<vmem>>, vector<128x128xf32>
    %cst = arith.constant dense<0.000000e+00> : vector<16x128xf32>
    %5 = tpu.matmul %3, %4, %cst {dimension_numbers = #tpu.dot_dimension_numbers<[1], [0], [0], [1], [0, 0, 1, 1], [], []>} : vector<16x128xf32>, vector<128x128xf32>, vector<16x128xf32> -> vector<16x128xf32>
    %c0_4 = arith.constant 0 : index
    %c0_5 = arith.constant 0 : index
    %c0_6 = arith.constant 0 : index
    %6 = vector.load %arg4[%c0_4, %c0_5, %c0_6] : memref<1x1x128xf32, #tpu.memory_space<vmem>>, vector<1x1x128xf32>
    %7 = vector.shape_cast %6 : vector<1x1x128xf32> to vector<1x128xf32>
    %8 = vector.broadcast %7 : vector<1x128xf32> to vector<16x128xf32>
    %9 = arith.addf %5, %8 : vector<16x128xf32>
    %c0_7 = arith.constant 0 : index
    %c0_8 = arith.constant 0 : index
    %10 = vector.load %arg5[%c0_7, %c0_8] : memref<16x128xf32, #tpu.memory_space<vmem>>, vector<16x128xf32>
    tpu.vector_store %arg5[%c0_7, %c0_8], %9 {strides = array<i32>} : memref<16x128xf32, #tpu.memory_space<vmem>>, vector<16x128xf32>,
    return
  }
  func.func @transform_0(%arg0: i32, %arg1: i32) -> (i32, i32) {
    %c0_i32 = arith.constant 0 : i32
    return %arg1, %arg0 : i32, i32
  }
  func.func @transform_1(%arg0: i32, %arg1: i32) -> (i32, i32, i32) {
    %c0_i32 = arith.constant 0 : i32
    %c0_i32_0 = arith.constant 0 : i32
    %c0_i32_1 = arith.constant 0 : i32
    return %arg0, %c0_i32, %c0_i32_0 : i32, i32, i32
  }
  func.func @transform_2(%arg0: i32, %arg1: i32) -> (i32, i32, i32) {
    %c0_i32 = arith.constant 0 : i32
    %c0_i32_0 = arith.constant 0 : i32
    %c0_i32_1 = arith.constant 0 : i32
    return %arg0, %c0_i32, %c0_i32_0 : i32, i32, i32
  }
  func.func @transform_3(%arg0: i32, %arg1: i32) -> (i32, i32) {
    %c0_i32 = arith.constant 0 : i32
    return %arg1, %arg0 : i32, i32
  }
}

</mosaic_0001>

<llo_original>
// kernel: tpu_custom_call.1
$region0: #{tpu_custom_call.1}
  #allocation0 [shape = 'u32[]', space=smem, size = 0x4, offset = 0x4, fixed_abs, tag = 'smem constant byte address 0x4 - core index']
  #allocation1 [shape = 'u32[144,128]{1,0:T(1,128)}', space=vmem, size = 0x12000, scoped, tag = 'internal scratch']
  #allocation2 [shape = 'f32[128,128]{1,0:T(8,128)}', space=vmem, size = 0x10000, scoped, tag = 'scratch operand']
  %s0 = inlined_call_operand.hbm [shape: f32[16,512], index: 0, kind: input, shape index: {}]
  %s1 = inlined_call_operand.hbm [shape: f32[4,128,128], index: 1, kind: input, shape index: {}]
  %s2 = inlined_call_operand.vmem [shape: f32[4,1,128], index: 2, kind: input, shape index: {}]
  %s3 = inlined_call_operand.hbm [shape: f32[16,512], index: 3, kind: output, shape index: {}]
  %s4 = sld [smem:[#allocation0]]
  $region57: #{tpu_custom_call.1} parent=0
    _
  %s6 = ssub.s32 1, %s4
  %s7 = scalar_select 0, %s6, %s4
  $region1: #{tpu_custom_call.1} parent=0
    #allocation3 [shape = 'u8[16384]{0}', space=vmem, size = 0x4000, scoped, tag = 'input window, operand 0']
    #allocation4 [shape = 's32[2]{0}', space=sflag, size = 0x8, scoped, tag = 'scoped memory for tpu_custom_call.1']
    #allocation5 [shape = 's32[2]{0}', space=sflag, size = 0x8, scoped, tag = 'scoped memory for tpu_custom_call.1']
    #allocation6 [shape = 'u8[131072]{0}', space=vmem, size = 0x20000, scoped, tag = 'input window, operand 1']
    #allocation7 [shape = 's32[2]{0}', space=sflag, size = 0x8, scoped, tag = 'scoped memory for tpu_custom_call.1']
    #allocation8 [shape = 'u8[16384]{0}', space=vmem, size = 0x4000, scoped, tag = 'output window, operand 0']
    %8 = vsyncpa [#allocation4], 0
    %s9 = scalar_lea.sflag [#allocation4], 1
    %10 = vsyncpa %s9, 0
    %11 = vsyncpa [#allocation7], 0
    %s12 = scalar_lea.sflag [#allocation7], 1
    %13 = vsyncpa %s12, 0
    %14 = vsyncpa [#allocation5], 0
    %s15 = scalar_lea.sflag [#allocation5], 1
    %16 = vsyncpa %s15, 0
    loop: start=0, step=1, limit=6
    $region2: #{tpu_custom_call.1} parent=1 // loop_pre_header
      _
    $region3: #{tpu_custom_call.1} parent=1 // loop_header
      %s18 = sphi 0, %s22
      %p19 = scmp.ge.s32.totalorder %s18, 6
      %s25 = sphi 0, %s37
      %s26 = sphi 0, %s33
      %s27 = sphi 0, %s25
      %s28 = sphi 0, %s26
      %s29 = sphi 0, %s27
      %s30 = sphi 0, %s28
      %s42 = sphi 0, %s44
      %s45 = sphi 0, %s42
      %s46 = sphi 0, %s45
      %s62 = sphi 0, %s46
      %s68 = sphi 0, %s70
      %s71 = sphi 0, %s68
      %s72 = sphi 0, %s71
      %s88 = sphi 0, %s72
      %s94 = sphi 0, %s96
      %s97 = sphi 0, %s94
      %s98 = sphi 0, %s97
      %s114 = sphi 0, %s98
      %s122 = sphi 0, %s124
      %s125 = sphi 0, %s122
      %s126 = sphi 0, %s125
      %s142 = sphi 0, %s126
    $region4: #{tpu_custom_call.1} parent=1 // loop_header_branch
      %21 = sbr.rel (%p19) target = $region8
    $region5: #{tpu_custom_call.1} parent=1 // loop_body
      %s23 = ssub.s32 %s18, 1
      %s24 = ssub.s32 %s18, 2
      %s31 = sadd.s32 1, %s26
      %p32 = scmp.ge.s32.totalorder %s31, 1
      %s33 = scalar_select %p32, 0, %s31
      %s34 = sadd.s32 1, %s25
      %s35 = scalar_select %p32, %s34, %s25
      %p36 = scmp.ge.s32.totalorder %s35, 4
      %s37 = scalar_select %p36, 0, %s35
      %s38 = ssub.s32 %s26, %s33
      %s39 = ssub.s32 %s25, %s37
      %s40 = sor.u32 %s38, %s39
      %p41 = scmp.eq.s32.totalorder %s40, 0
      %s43 = sadd.s32 %s42, 1
      %s44 = scalar_select %p41, %s42, %s43
      %p47 = pneg %p41
      %p48 = scmp.eq.s32.totalorder %s18, 3
      %p49 = por %p47, %p48
      %p50 = scmp.ne.s32.totalorder %s42, %s45
      %p51 = scmp.eq.s32.totalorder %s18, 0
      %p52 = por %p50, %p51
      %p53 = scmp.ne.s32.totalorder %s42, %s45
      %p54 = scmp.eq.s32.totalorder %s23, 3
      %p55 = por %p53, %p54
      %p56 = scmp.ne.s32.totalorder %s45, %s46
      %p57 = scmp.eq.s32.totalorder %s23, 0
      %p58 = por %p56, %p57
      %p59 = scmp.ne.s32.totalorder %s45, %s46
      %p60 = scmp.eq.s32.totalorder %s24, 3
      %p61 = por %p59, %p60
      %p63 = scmp.ne.s32.totalorder %s46, %s62
      %p64 = scmp.eq.s32.totalorder %s24, 0
      %p65 = por %p63, %p64
      %s66 = ssub.s32 %s25, %s37
      %p67 = scmp.eq.s32.totalorder %s66, 0
      %s69 = sadd.s32 %s68, 1
      %s70 = scalar_select %p67, %s68, %s69
      %p73 = pneg %p67
      %p74 = scmp.eq.s32.totalorder %s18, 3
      %p75 = por %p73, %p74
      %p76 = scmp.ne.s32.totalorder %s68, %s71
      %p77 = scmp.eq.s32.totalorder %s18, 0
      %p78 = por %p76, %p77
      %p79 = scmp.ne.s32.totalorder %s68, %s71
      %p80 = scmp.eq.s32.totalorder %s23, 3
      %p81 = por %p79, %p80
      %p82 = scmp.ne.s32.totalorder %s71, %s72
      %p83 = scmp.eq.s32.totalorder %s23, 0
      %p84 = por %p82, %p83
      %p85 = scmp.ne.s32.totalorder %s71, %s72
      %p86 = scmp.eq.s32.totalorder %s24, 3
      %p87 = por %p85, %p86
      %p89 = scmp.ne.s32.totalorder %s72, %s88
      %p90 = scmp.eq.s32.totalorder %s24, 0
      %p91 = por %p89, %p90
      %s92 = ssub.s32 %s25, %s37
      %p93 = scmp.eq.s32.totalorder %s92, 0
      %s95 = sadd.s32 %s94, 1
      %s96 = scalar_select %p93, %s94, %s95
      %p99 = pneg %p93
      %p100 = scmp.eq.s32.totalorder %s18, 3
      %p101 = por %p99, %p100
      %p102 = scmp.ne.s32.totalorder %s94, %s97
      %p103 = scmp.eq.s32.totalorder %s18, 0
      %p104 = por %p102, %p103
      %p105 = scmp.ne.s32.totalorder %s94, %s97
      %p106 = scmp.eq.s32.totalorder %s23, 3
      %p107 = por %p105, %p106
      %p108 = scmp.ne.s32.totalorder %s97, %s98
      %p109 = scmp.eq.s32.totalorder %s23, 0
      %p110 = por %p108, %p109
      %p111 = scmp.ne.s32.totalorder %s97, %s98
      %p112 = scmp.eq.s32.totalorder %s24, 3
      %p113 = por %p111, %p112
      %p115 = scmp.ne.s32.totalorder %s98, %s114
      %p116 = scmp.eq.s32.totalorder %s24, 0
      %p117 = por %p115, %p116
      %s118 = ssub.s32 %s26, %s33
      %s119 = ssub.s32 %s25, %s37
      %s120 = sor.u32 %s118, %s119
      %p121 = scmp.eq.s32.totalorder %s120, 0
      %s123 = sadd.s32 %s122, 1
      %s124 = scalar_select %p121, %s122, %s123
      %p127 = pneg %p121
      %p128 = scmp.eq.s32.totalorder %s18, 3
      %p129 = por %p127, %p128
      %p130 = scmp.ne.s32.totalorder %s122, %s125
      %p131 = scmp.eq.s32.totalorder %s18, 0
      %p132 = por %p130, %p131
      %p133 = scmp.ne.s32.totalorder %s122, %s125
      %p134 = scmp.eq.s32.totalorder %s23, 3
      %p135 = por %p133, %p134
      %p136 = scmp.ne.s32.totalorder %s125, %s126
      %p137 = scmp.eq.s32.totalorder %s23, 0
      %p138 = por %p136, %p137
      %p139 = scmp.ne.s32.totalorder %s125, %s126
      %p140 = scmp.eq.s32.totalorder %s24, 3
      %p141 = por %p139, %p140
      %p143 = scmp.ne.s32.totalorder %s126, %s142
      %p144 = scmp.eq.s32.totalorder %s24, 0
      %p145 = por %p143, %p144
      %p146 = scmp.le.s32.totalorder 1, %s18
      %p147 = scmp.lt.s32.totalorder %s18, 5
      %p148 = pnand %p146, %p147
      %p149 = pneg %p148
      // Predicated region
      $region9: #{tpu_custom_call.1} parent=5 // pred_check
        _
      $region10: #{tpu_custom_call.1} parent=5 // pred_check_branch
        %151 = sbr.rel (%p148) target = $region12
      $region11: #{tpu_custom_call.1} parent=5 // pred_region
        %s152 = ssub.s32 %s18, 1
      $region12: #{tpu_custom_call.1} parent=5 // pred_fallthru
        _
      %p153 = scmp.lt.s32.totalorder %s18, 4
      // Predicated region
      $region13: #{tpu_custom_call.1} parent=5 // pred_check
        %p154 = pneg %p153
      $region14: #{tpu_custom_call.1} parent=5 // pred_check_branch
        %156 = sbr.rel (%p154) target = $region16
      $region15: #{tpu_custom_call.1} parent=5 // pred_region
        // Predicated region
        $region17: #{tpu_custom_call.1} parent=15 // pred_check
          %p157 = pneg %p52
        $region18: #{tpu_custom_call.1} parent=15 // pred_check_branch
          %159 = sbr.rel (%p157) target = $region20
        $region19: #{tpu_custom_call.1} parent=15 // pred_region
          %s160 = sand.u32 %s42, 1
          %s161 = scalar_lea.sflag [#allocation4], %s160
          %s162 = sand.u32 %s42, 1
          %s163 = smul.addr %s162, 16
          %s164 = scalar_lea.vmem [#allocation3], %s163
          %s165 = smul.u32 2, %s26
          %s167 = ssub.s32 256, 256
          %168 = vsyncadd %s161, %s167
          %s169 = smul.addr %s165, 4
          %s170 = sadd.s32 %s25, %s169
          %s171 = smul.addr %s170, 128
          %s172 = scalar_lea.hbm %s0, %s171
          %s173 = sshll.u32 %s164, 4
          %s174 = int_to_ptr.vmem [resolvable:$true] %s173
          %179 = dma.hbm_to_vmem [thread:$0]  %s172, 256, %s174, %s161, 512, 128, 8
        $region20: #{tpu_custom_call.1} parent=15 // pred_fallthru
          _
        // Predicated region
        $region21: #{tpu_custom_call.1} parent=15 // pred_check
          %p180 = pneg %p78
        $region22: #{tpu_custom_call.1} parent=15 // pred_check_branch
          %182 = sbr.rel (%p180) target = $region24
        $region23: #{tpu_custom_call.1} parent=15 // pred_region
          %s183 = sand.u32 %s68, 1
          %s184 = scalar_lea.sflag [#allocation7], %s183
          %s185 = sand.u32 %s68, 1
          %s186 = smul.addr %s185, 128
          %s187 = scalar_lea.vmem [#allocation6], %s186
          %s189 = ssub.s32 2048, 2048
          %190 = vsyncadd %s184, %s189
          %s191 = smul.addr %s25, 16
          %s192 = smul.addr %s191, 128
          %s193 = scalar_lea.hbm %s1, %s192
          %s194 = sshll.u32 %s187, 4
          %s195 = int_to_ptr.vmem [resolvable:$true] %s194
          %200 = dma.hbm_to_vmem [thread:$0]  %s193, 2048, %s195, %s184, 128, 128, 8
        $region24: #{tpu_custom_call.1} parent=15 // pred_fallthru
          _
        // Predicated region
        $region25: #{tpu_custom_call.1} parent=15 // pred_check
          %p201 = pneg %p104
        $region26: #{tpu_custom_call.1} parent=15 // pred_check_branch
          %203 = sbr.rel (%p201) target = $region28
        $region27: #{tpu_custom_call.1} parent=15 // pred_region
          %p204 = scmp.lt.s32.totalorder %s25, 3
          %s205 = scalar_select %p204, %s25, 3
          %s206 = scalar_lea.vmem %s2, %s205
        $region28: #{tpu_custom_call.1} parent=15 // pred_fallthru
          _
      $region16: #{tpu_custom_call.1} parent=5 // pred_fallthru
        _
      %p207 = scmp.le.s32.totalorder 1, %s18
      %p208 = scmp.lt.s32.totalorder %s18, 5
      %p209 = pnand %p207, %p208
      %p210 = pneg %p209
      // Predicated region
      $region29: #{tpu_custom_call.1} parent=5 // pred_check
        _
      $region30: #{tpu_custom_call.1} parent=5 // pred_check_branch
        %212 = sbr.rel (%p209) target = $region32
      $region31: #{tpu_custom_call.1} parent=5 // pred_region
        %s213 = ssub.s32 %s18, 1
        %s214 = sand.u32 %s45, 1
        %s215 = scalar_lea.sflag [#allocation4], %s214
        %s216 = sand.u32 %s45, 1
        %s217 = smul.addr %s216, 16
        %s218 = scalar_lea.vmem [#allocation3], %s217
        // Predicated region
        $region33: #{tpu_custom_call.1} parent=31 // pred_check
          %p219 = pneg %p58
        $region34: #{tpu_custom_call.1} parent=31 // pred_check_branch
          %221 = sbr.rel (%p219) target = $region36
        $region35: #{tpu_custom_call.1} parent=31 // pred_region
          %222 = dma.done %s215, 256
        $region36: #{tpu_custom_call.1} parent=31 // pred_fallthru
          _
        %s223 = sand.u32 %s71, 1
        %s224 = scalar_lea.sflag [#allocation7], %s223
        %s225 = sand.u32 %s71, 1
        %s226 = smul.addr %s225, 128
        %s227 = scalar_lea.vmem [#allocation6], %s226
        // Predicated region
        $region37: #{tpu_custom_call.1} parent=31 // pred_check
          %p228 = pneg %p84
        $region38: #{tpu_custom_call.1} parent=31 // pred_check_branch
          %230 = sbr.rel (%p228) target = $region40
        $region39: #{tpu_custom_call.1} parent=31 // pred_region
          %231 = dma.done %s224, 2048
        $region40: #{tpu_custom_call.1} parent=31 // pred_fallthru
          _
        %s232 = sand.u32 %s45, 1
        %s233 = scalar_lea.sflag [#allocation4], %s232
        %s234 = sand.u32 %s45, 1
        %s235 = smul.addr %s234, 16
        %s236 = scalar_lea.vmem [#allocation3], %s235
        %p237 = pneg %p58
        %p238 = pneg %p55
        %s239 = sand.u32 %s71, 1
        %s240 = scalar_lea.sflag [#allocation7], %s239
        %s241 = sand.u32 %s71, 1
        %s242 = smul.addr %s241, 128
        %s243 = scalar_lea.vmem [#allocation6], %s242
        %p244 = pneg %p84
        %p245 = pneg %p81
        %p246 = scmp.lt.s32.totalorder %s27, 3
        %s247 = scalar_select %p246, %s27, 3
        %s248 = scalar_lea.vmem %s2, %s247
        %p249 = pneg %p110
        %p250 = pneg %p107
        %p251 = pneg %p138
        %p252 = pneg %p135
        %s253 = sand.u32 %s125, 1
        %s254 = scalar_lea.sflag [#allocation5], %s253
        %s255 = sand.u32 %s125, 1
        %s256 = smul.addr %s255, 16
        %s257 = scalar_lea.vmem [#allocation8], %s256
        %s258 = smul.u32 2, %s28
        %p259 = scmp.lt.s32.totalorder %s27, 3
        %s260 = scalar_select %p259, %s27, 3
        %s261 = scalar_lea.vmem %s2, %s260
        %s262 = smul.u32 2, %s28
        %p263 = scmp.eq.s32.totalorder %s28, 0
        // Predicated region
        $region41: #{tpu_custom_call.1} parent=31 // pred_check
          %p264 = pneg %p263
        $region42: #{tpu_custom_call.1} parent=31 // pred_check_branch
          %266 = sbr.rel (%p264) target = $region44
        $region43: #{tpu_custom_call.1} parent=31 // pred_region
          %v267 = vld [vmem:[%s227] sm:$0xff]
          %v268 = vld [vmem:[%s227 + $0x8] sm:$0xff]
          %v269 = vld [vmem:[%s227 + $0x10] sm:$0xff]
          %v270 = vld [vmem:[%s227 + $0x18] sm:$0xff]
          %v271 = vld [vmem:[%s227 + $0x20] sm:$0xff]
          %v272 = vld [vmem:[%s227 + $0x28] sm:$0xff]
          %v273 = vld [vmem:[%s227 + $0x30] sm:$0xff]
          %v274 = vld [vmem:[%s227 + $0x38] sm:$0xff]
          %v275 = vld [vmem:[%s227 + $0x40] sm:$0xff]
          %v276 = vld [vmem:[%s227 + $0x48] sm:$0xff]
          %v277 = vld [vmem:[%s227 + $0x50] sm:$0xff]
          %v278 = vld [vmem:[%s227 + $0x58] sm:$0xff]
          %v279 = vld [vmem:[%s227 + $0x60] sm:$0xff]
          %v280 = vld [vmem:[%s227 + $0x68] sm:$0xff]
          %v281 = vld [vmem:[%s227 + $0x70] sm:$0xff]
          %v282 = vld [vmem:[%s227 + $0x78] sm:$0xff]
          %283 = vxpose.xlu0.b32.start [1/16] %v267, 128
          %284 = vxpose.xlu0.b32.cont [2/16] %v268, 128
          %285 = vxpose.xlu0.b32.cont [3/16] %v269, 128
          %286 = vxpose.xlu0.b32.cont [4/16] %v270, 128
          %287 = vxpose.xlu0.b32.cont [5/16] %v271, 128
          %288 = vxpose.xlu0.b32.cont [6/16] %v272, 128
          %289 = vxpose.xlu0.b32.cont [7/16] %v273, 128
          %290 = vxpose.xlu0.b32.cont [8/16] %v274, 128
          %291 = vxpose.xlu0.b32.cont [9/16] %v275, 128
          %292 = vxpose.xlu0.b32.cont [10/16] %v276, 128
          %293 = vxpose.xlu0.b32.cont [11/16] %v277, 128
          %294 = vxpose.xlu0.b32.cont [12/16] %v278, 128
          %295 = vxpose.xlu0.b32.cont [13/16] %v279, 128
          %296 = vxpose.xlu0.b32.cont [14/16] %v280, 128
          %297 = vxpose.xlu0.b32.cont [15/16] %v281, 128
          %298 = vxpose.xlu0.b32.end [16/16] %v282, 128
          %v299 = vpop.trf.xlu0
          %v300 = vpop.trf.xlu0
          %v301 = vpop.trf.xlu0
          %v302 = vpop.trf.xlu0
          %v303 = vpop.trf.xlu0
          %v304 = vpop.trf.xlu0
          %v305 = vpop.trf.xlu0
          %v306 = vpop.trf.xlu0
          %v307 = vpop.trf.xlu0
          %v308 = vpop.trf.xlu0
          %v309 = vpop.trf.xlu0
          %v310 = vpop.trf.xlu0
          %v311 = vpop.trf.xlu0
          %v312 = vpop.trf.xlu0
          %v313 = vpop.trf.xlu0
          %v314 = vpop.trf.xlu0
          %315 = vst [vmem:[#allocation2] sm:$0xff] %v299
          %316 = vst [vmem:[#allocation2 + $0x8] sm:$0xff] %v300
          %317 = vst [vmem:[#allocation2 + $0x10] sm:$0xff] %v301
          %318 = vst [vmem:[#allocation2 + $0x18] sm:$0xff] %v302
          %319 = vst [vmem:[#allocation2 + $0x20] sm:$0xff] %v303
          %320 = vst [vmem:[#allocation2 + $0x28] sm:$0xff] %v304
          %321 = vst [vmem:[#allocation2 + $0x30] sm:$0xff] %v305
          %322 = vst [vmem:[#allocation2 + $0x38] sm:$0xff] %v306
          %323 = vst [vmem:[#allocation2 + $0x40] sm:$0xff] %v307
          %324 = vst [vmem:[#allocation2 + $0x48] sm:$0xff] %v308
          %325 = vst [vmem:[#allocation2 + $0x50] sm:$0xff] %v309
          %326 = vst [vmem:[#allocation2 + $0x58] sm:$0xff] %v310
          %327 = vst [vmem:[#allocation2 + $0x60] sm:$0xff] %v311
          %328 = vst [vmem:[#allocation2 + $0x68] sm:$0xff] %v312
          %329 = vst [vmem:[#allocation2 + $0x70] sm:$0xff] %v313
          %330 = vst [vmem:[#allocation2 + $0x78] sm:$0xff] %v314
        $region44: #{tpu_custom_call.1} parent=31 // pred_fallthru
          _
        %v331 = vld [vmem:[%s218] sm:$0xff]
        %v332 = vld [vmem:[%s218 + $0x8] sm:$0xff]
        %v333 = vld [vmem:[#allocation2] sm:$0xff]
        %v334 = vld [vmem:[#allocation2 + $0x8] sm:$0xff]
        %v335 = vld [vmem:[#allocation2 + $0x10] sm:$0xff]
        %v336 = vld [vmem:[#allocation2 + $0x18] sm:$0xff]
        %v337 = vld [vmem:[#allocation2 + $0x20] sm:$0xff]
        %v338 = vld [vmem:[#allocation2 + $0x28] sm:$0xff]
        %v339 = vld [vmem:[#allocation2 + $0x30] sm:$0xff]
        %v340 = vld [vmem:[#allocation2 + $0x38] sm:$0xff]
        %v341 = vld [vmem:[#allocation2 + $0x40] sm:$0xff]
        %v342 = vld [vmem:[#allocation2 + $0x48] sm:$0xff]
        %v343 = vld [vmem:[#allocation2 + $0x50] sm:$0xff]
        %v344 = vld [vmem:[#allocation2 + $0x58] sm:$0xff]
        %v345 = vld [vmem:[#allocation2 + $0x60] sm:$0xff]
        %v346 = vld [vmem:[#allocation2 + $0x68] sm:$0xff]
        %v347 = vld [vmem:[#allocation2 + $0x70] sm:$0xff]
        %v348 = vld [vmem:[#allocation2 + $0x78] sm:$0xff]
        %v349 = vld [vmem:[%s261] sm:$0x1]
        %v351 = vlaneseq
        %v352 = vshrl.u32 %v351, 7
        %v353 = vsub.s32 0, %v352
        %v354 = vrot.slane %v349, %v353
        %356 = vmatprep.subr.mxu0 0.0
        %357 = vmatpush1.msra.mxu0 %v333
        %358 = vmatprep.subr.mxu0 0.0
        %359 = vmatpush1.msra.mxu0 %v334
        %360 = vmatprep.subr.mxu0 0.0
        %361 = vmatpush1.msra.mxu0 %v335
        %362 = vmatprep.subr.mxu0 0.0
        %363 = vmatpush1.msra.mxu0 %v336
        %364 = vmatprep.subr.mxu0 0.0
        %365 = vmatpush1.msra.mxu0 %v337
        %366 = vmatprep.subr.mxu0 0.0
        %367 = vmatpush1.msra.mxu0 %v338
        %368 = vmatprep.subr.mxu0 0.0
        %369 = vmatpush1.msra.mxu0 %v339
        %370 = vmatprep.subr.mxu0 0.0
        %371 = vmatpush1.msra.mxu0 %v340
        %372 = vmatprep.subr.mxu0 0.0
        %373 = vmatpush1.msra.mxu0 %v341
        %374 = vmatprep.subr.mxu0 0.0
        %375 = vmatpush1.msra.mxu0 %v342
        %376 = vmatprep.subr.mxu0 0.0
        %377 = vmatpush1.msra.mxu0 %v343
        %378 = vmatprep.subr.mxu0 0.0
        %379 = vmatpush1.msra.mxu0 %v344
        %380 = vmatprep.subr.mxu0 0.0
        %381 = vmatpush1.msra.mxu0 %v345
        %382 = vmatprep.subr.mxu0 0.0
        %383 = vmatpush1.msra.mxu0 %v346
        %384 = vmatprep.subr.mxu0 0.0
        %385 = vmatpush1.msra.mxu0 %v347
        %386 = vmatprep.subr.mxu0 0.0
        %387 = vmatpush1.msra.mxu0 %v348
        %388 = vmatprep.subr.mxu0 0.0
        %389 = vmatpush1.msra.mxu0 0.0
        %390 = vmatprep.subr.mxu0 0.0
        %391 = vmatpush1.msra.mxu0 0.0
        %392 = vmatprep.subr.mxu0 0.0
        %393 = vmatpush1.msra.mxu0 0.0
        %394 = vmatprep.subr.mxu0 0.0
        %395 = vmatpush1.msra.mxu0 0.0
        %396 = vmatprep.subr.mxu0 0.0
        %397 = vmatpush1.msra.mxu0 0.0
        %398 = vmatprep.subr.mxu0 0.0
        %399 = vmatpush1.msra.mxu0 0.0
        %400 = vmatprep.subr.mxu0 0.0
        %401 = vmatpush1.msra.mxu0 0.0
        %402 = vmatprep.subr.mxu0 0.0
        %403 = vmatpush1.msra.mxu0 0.0
        %404 = vmatprep.subr.mxu0 0.0
        %405 = vmatpush1.msra.mxu0 0.0
        %406 = vmatprep.subr.mxu0 0.0
        %407 = vmatpush1.msra.mxu0 0.0
        %408 = vmatprep.subr.mxu0 0.0
        %409 = vmatpush1.msra.mxu0 0.0
        %410 = vmatprep.subr.mxu0 0.0
        %411 = vmatpush1.msra.mxu0 0.0
        %412 = vmatprep.subr.mxu0 0.0
        %413 = vmatpush1.msra.mxu0 0.0
        %414 = vmatprep.subr.mxu0 0.0
        %415 = vmatpush1.msra.mxu0 0.0
        %416 = vmatprep.subr.mxu0 0.0
        %417 = vmatpush1.msra.mxu0 0.0
        %418 = vmatprep.subr.mxu0 0.0
        %419 = vmatpush1.msra.mxu0 0.0
        %420 = vmatprep.mubr.f32.mxu0 0.0
        %421 = vmatmul.mubr.f32.gmra.mrb[0].mxu0 %v331
        %v422 = vpop.f32.mrb[0].mxu0
        %v423 = vadd.f32 %v354, %v422
        %v424 = vpop.f32.mrb[0].mxu0
        %425 = vmatprep.mubr.f32.mxu0 0.0
        %426 = vmatmul.mubr.f32.gmra.mrb[0].mxu0 %v332
        %v427 = vpop.f32.mrb[0].mxu0
        %v428 = vadd.f32 %v354, %v427
        %v429 = vpop.f32.mrb[0].mxu0
        %430 = vdwg.mxu0
        %431 = vst [vmem:[%s257] sm:$0xff] %v423
        %432 = vst [vmem:[%s257 + $0x8] sm:$0xff] %v428
        %s433 = sand.u32 %s125, 1
        %s434 = scalar_lea.sflag [#allocation5], %s433
        %s435 = sand.u32 %s125, 1
        %s436 = smul.addr %s435, 16
        %s437 = scalar_lea.vmem [#allocation8], %s436
        // Predicated region
        $region45: #{tpu_custom_call.1} parent=31 // pred_check
          %p438 = pneg %p135
        $region46: #{tpu_custom_call.1} parent=31 // pred_check_branch
          %440 = sbr.rel (%p438) target = $region48
        $region47: #{tpu_custom_call.1} parent=31 // pred_region
          %s441 = smul.u32 2, %s28
          %s443 = ssub.s32 256, 256
          %444 = vsyncadd %s434, %s443
          %s445 = smul.addr %s441, 4
          %s446 = sadd.s32 %s27, %s445
          %s447 = smul.addr %s446, 128
          %s448 = scalar_lea.hbm %s3, %s447
          %s449 = sshll.u32 %s437, 4
          %s450 = int_to_ptr.vmem [resolvable:$true] %s449
          %455 = dma.vmem_to_hbm [thread:$0]  %s450, 256, %s448, %s434, 128, 512, 8
        $region48: #{tpu_custom_call.1} parent=31 // pred_fallthru
          _
      $region32: #{tpu_custom_call.1} parent=5 // pred_fallthru
        _
      %p456 = scmp.le.s32.totalorder 2, %s18
      // Predicated region
      $region49: #{tpu_custom_call.1} parent=5 // pred_check
        %p457 = pneg %p456
      $region50: #{tpu_custom_call.1} parent=5 // pred_check_branch
        %459 = sbr.rel (%p457) target = $region52
      $region51: #{tpu_custom_call.1} parent=5 // pred_region
        %s460 = ssub.s32 %s18, 2
        // Predicated region
        $region53: #{tpu_custom_call.1} parent=51 // pred_check
          %p461 = pneg %p141
        $region54: #{tpu_custom_call.1} parent=51 // pred_check_branch
          %463 = sbr.rel (%p461) target = $region56
        $region55: #{tpu_custom_call.1} parent=51 // pred_region
          %s464 = sand.u32 %s126, 1
          %s465 = scalar_lea.sflag [#allocation5], %s464
          %s466 = sand.u32 %s126, 1
          %s467 = smul.addr %s466, 16
          %s468 = scalar_lea.vmem [#allocation8], %s467
          %469 = dma.done %s465, 256
        $region56: #{tpu_custom_call.1} parent=51 // pred_fallthru
          _
      $region52: #{tpu_custom_call.1} parent=5 // pred_fallthru
        _
    $region6: #{tpu_custom_call.1} parent=1 // loop_footer
      %s22 = sadd.s32 1, %s18
    $region7: #{tpu_custom_call.1} parent=1 // loop_footer_branch
      %17 = sbr.rel target = $region3
    $region8: #{tpu_custom_call.1} parent=1 // loop_exit
      _
    %470 = vsyncpa [#allocation4], 1
    %s471 = scalar_lea.sflag [#allocation4], 1
    %472 = vsyncpa %s471, 1
    %473 = vsyncpa [#allocation7], 1
    %s474 = scalar_lea.sflag [#allocation7], 1
    %475 = vsyncpa %s474, 1
    %476 = vsyncpa [#allocation5], 1
    %s477 = scalar_lea.sflag [#allocation5], 1
    %478 = vsyncpa %s477, 1

</llo_original>
